<compile_context>
chip_gen: v5e
topology: v5e:2x2
jax: 0.10.0
libtpu: 0.0.40
codegen_flags: <defaults>
</compile_context>

<pallas_src>
import jax
import jax.numpy as jnp
from jax.experimental import pallas as pl
from jax.experimental.pallas import tpu as pltpu

# Hyperparameters implied by ShakeSpeareRNNModel.architect()
N_CHARACTERS   = 100   # len(string.printable)
EMBEDDING_SIZE = 70
HIDDEN_SIZE    = 100
NUM_LAYERS     = 2
BATCH_SIZE     = 1

# Padded (lane-dense) sizes used inside the kernel.
HP = 128               # hidden padded to one full lane tile
CP = 128               # n_characters (decoder output) padded to one lane tile
EP_ROWS = 128          # rows of the embedding-projection table (>= N_CHARACTERS)

UNROLL = 4             # manual unroll factor for the recurrence loop


def shakespeare_rnn_seq_kernel(
    x_proj_ref,    # VMEM (T, HP)   f32 : emb[tok]@W_ih0 + b_ih0 + b_hh0 (pre-gathered)
    w_hh0_ref,     # VMEM (HP, HP)  f32
    w_ih1_ref,     # VMEM (HP, HP)  f32
    w_hh1_ref,     # VMEM (HP, HP)  f32
    b1_ref,        # VMEM (1, HP)   f32 : b_ih1 + b_hh1
    w_dec_ref,     # VMEM (HP, CP)  f32
    b_dec_ref,     # VMEM (1, CP)   f32
    h_ref,         # VMEM (2, HP)   f32 : initial hidden (padded); aliased with h_out_ref
    out_ref,       # VMEM (T, CP)   f32 : per-step decoder logits
    h_out_ref,     # VMEM (2, HP)   f32 : final hidden (padded); aliased with h_ref
    h1_hist_ref,   # VMEM scratch (T, HP) f32 : h1' history for the hoisted decoder matmul
):
    T = out_ref.shape[0]
    b1 = b1_ref[...]    # hoisted: JAX does not CSE per-iteration broadcast/reads

    def one_step(t, h0, h1):
        # Layer-1 recurrent matmul first: depends only on previous-step h1,
        # so it can overlap with layer 0's matmul + tanh.
        acc1 = jnp.dot(h1, w_hh1_ref[...], preferred_element_type=jnp.float32)

        x_proj = x_proj_ref[pl.ds(t, 1), :]                                  # (1, HP)

        # Layer 0:  h0' = tanh(x@W_ih0 + b_ih0 + b_hh0 + h0@W_hh0)
        h0n = jnp.tanh(
            x_proj
            + jnp.dot(h0, w_hh0_ref[...], preferred_element_type=jnp.float32))

        # Layer 1:  h1' = tanh(h1@W_hh1 + h0'@W_ih1 + (b_ih1 + b_hh1))
        h1n = jnp.tanh(
            acc1
            + jnp.dot(h0n, w_ih1_ref[...], preferred_element_type=jnp.float32)
            + b1)

        # Record h1' for the hoisted (batched) decoder matmul after the loop.
        h1_hist_ref[pl.ds(t, 1), :] = h1n
        return h0n, h1n

    h0 = h_ref[0:1, :]
    h1 = h_ref[1:2, :]

    num_blocks = T // UNROLL

    def block(i, carry):
        h0, h1 = carry
        base = i * UNROLL
        for u in range(UNROLL):          # manual unroll: adjacent steps visible to the scheduler
            h0, h1 = one_step(base + u, h0, h1)
        return (h0, h1)

    h0, h1 = jax.lax.fori_loop(0, num_blocks, block, (h0, h1))
    for t in range(num_blocks * UNROLL, T):   # static remainder (T % UNROLL steps)
        h0, h1 = one_step(t, h0, h1)

    h_out_ref[0:1, :] = h0
    h_out_ref[1:2, :] = h1

    # Decoder hoisted out of the recurrence: one (T,HP)x(HP,CP) MXU matmul and
    # a full-width, unmasked (lane-dense) store of all logits.
    out_ref[...] = (
        jnp.dot(h1_hist_ref[...], w_dec_ref[...], preferred_element_type=jnp.float32)
        + b_dec_ref[...]
    )


def prepare_kernel_params(p):
    """Fuse / pad the torch-style parameters into the kernel layout."""
    f32 = jnp.float32
    hp = jax.lax.Precision.HIGHEST

    # emb_proj[c] = emb[c] @ W_ih0 + b_ih0 + b_hh0   (one-time precompute)
    emb_proj = (jnp.dot(p["emb"], p["w_ih0"], precision=hp)
                + p["b_ih0"] + p["b_hh0"])                                  # (100, 100)
    emb_proj_p = (jnp.zeros((EP_ROWS, HP), f32)
                  .at[:N_CHARACTERS, :HIDDEN_SIZE].set(emb_proj))

    pad_hh = lambda w: (jnp.zeros((HP, HP), f32)
                        .at[:HIDDEN_SIZE, :HIDDEN_SIZE].set(w))

    w_hh0_p = pad_hh(p["w_hh0"])
    w_ih1_p = pad_hh(p["w_ih1"])
    w_hh1_p = pad_hh(p["w_hh1"])
    b1_p = (jnp.zeros((1, HP), f32)
            .at[:, :HIDDEN_SIZE].set(p["b_ih1"] + p["b_hh1"]))

    w_dec_p = (jnp.zeros((HP, CP), f32)
               .at[:HIDDEN_SIZE, :N_CHARACTERS].set(p["w_dec"]))
    b_dec_p = (jnp.zeros((1, CP), f32)
               .at[:, :N_CHARACTERS].set(p["b_dec"]))

    return {"emb_proj": emb_proj_p,
            "w_hh0": w_hh0_p, "w_ih1": w_ih1_p, "w_hh1": w_hh1_p, "b1": b1_p,
            "w_dec": w_dec_p, "b_dec": b_dec_p}


@jax.jit
def shakespeare_rnn_forward(tokens, hidden, kparams):
    """Run the 2-layer RNN over a whole token sequence in one kernel call.

    tokens : (T,) int32 character indices
    hidden : (NUM_LAYERS, BATCH_SIZE, HIDDEN_SIZE) f32
    Returns (logits (T, N_CHARACTERS), new_hidden (NUM_LAYERS, BATCH_SIZE, HIDDEN_SIZE)).
    T = 1 reproduces a single torch forward() step.
    """
    T = tokens.shape[0]

    # One-shot XLA gather of the fused embedding projection (takes the
    # data-dependent lookup off the in-kernel serial chain).
    x_proj = jnp.take(kparams["emb_proj"], tokens, axis=0)          # (T, HP)

    h_pad = (jnp.zeros((NUM_LAYERS, HP), jnp.float32)
             .at[:, :HIDDEN_SIZE].set(hidden.reshape(NUM_LAYERS, HIDDEN_SIZE)))

    vmem = lambda: pl.BlockSpec(memory_space=pltpu.MemorySpace.VMEM)

    out_pad, h_new_pad = pl.pallas_call(
        shakespeare_rnn_seq_kernel,
        out_shape=(
            jax.ShapeDtypeStruct((T, CP), jnp.float32),
            jax.ShapeDtypeStruct((NUM_LAYERS, HP), jnp.float32),
        ),
        in_specs=[vmem() for _ in range(8)],
        out_specs=(vmem(), vmem()),
        scratch_shapes=[pltpu.VMEM((T, HP), jnp.float32)],
        # hidden-state buffer reused for the final-hidden output
        input_output_aliases={7: 1},
    )(
        x_proj,
        kparams["w_hh0"], kparams["w_ih1"], kparams["w_hh1"], kparams["b1"],
        kparams["w_dec"], kparams["b_dec"],
        h_pad,
    )

    out = out_pad[:, :N_CHARACTERS]
    h_new = h_new_pad[:, :HIDDEN_SIZE].reshape(NUM_LAYERS, BATCH_SIZE, HIDDEN_SIZE)
    return out, h_new


def init_params(key):
    """Deterministic parameter init (uniform, torch-like scale).
    Weight matrices are stored pre-transposed as (in_features, out_features)."""
    ks = jax.random.split(key, 11)
    u = lambda k, shape, bound: jax.random.uniform(
        k, shape, jnp.float32, minval=-bound, maxval=bound)
    kh = 1.0 / jnp.sqrt(HIDDEN_SIZE)
    return {
        "emb":   jax.random.normal(ks[0], (N_CHARACTERS, EMBEDDING_SIZE), jnp.float32),
        # RNN layer 0
        "w_ih0": u(ks[1], (EMBEDDING_SIZE, HIDDEN_SIZE), kh),
        "w_hh0": u(ks[2], (HIDDEN_SIZE, HIDDEN_SIZE), kh),
        "b_ih0": u(ks[3], (1, HIDDEN_SIZE), kh),
        "b_hh0": u(ks[4], (1, HIDDEN_SIZE), kh),
        # RNN layer 1
        "w_ih1": u(ks[5], (HIDDEN_SIZE, HIDDEN_SIZE), kh),
        "w_hh1": u(ks[6], (HIDDEN_SIZE, HIDDEN_SIZE), kh),
        "b_ih1": u(ks[7], (1, HIDDEN_SIZE), kh),
        "b_hh1": u(ks[8], (1, HIDDEN_SIZE), kh),
        # decoder Linear
        "w_dec": u(ks[9], (HIDDEN_SIZE, N_CHARACTERS), kh),
        "b_dec": u(ks[10], (1, N_CHARACTERS), kh),
    }


def ref_forward_seq(tokens, hidden, p):
    """Pure-JAX reference: the original (un-fused) torch math, stepped over tokens."""
    hp = jax.lax.Precision.HIGHEST
    dot = lambda a, b: jnp.dot(a, b, precision=hp)
    h0 = hidden[0]                                   # (1, HIDDEN_SIZE)
    h1 = hidden[1]                                   # (1, HIDDEN_SIZE)
    outs = []
    for t in range(tokens.shape[0]):
        x = p["emb"][tokens[t]][None, :]             # (1, EMBEDDING_SIZE)
        h0 = jnp.tanh(dot(x, p["w_ih0"]) + p["b_ih0"]
                      + dot(h0, p["w_hh0"]) + p["b_hh0"])
        h1 = jnp.tanh(dot(h0, p["w_ih1"]) + p["b_ih1"]
                      + dot(h1, p["w_hh1"]) + p["b_hh1"])
        outs.append(dot(h1, p["w_dec"]) + p["b_dec"])
    return jnp.concatenate(outs, axis=0), jnp.stack([h0, h1])   # (T,100), (2,1,100)


if __name__ == "__main__":
    key = jax.random.PRNGKey(0)
    pkey, tkey = jax.random.split(key)
    params = init_params(pkey)
    kparams = prepare_kernel_params(params)

    # A small chunk of character indices and the zero-initialized hidden state
    # (init_hidden(): zeros of shape (num_layers, batch, hidden)).
    T = 8
    tokens = jax.random.randint(tkey, (T,), 0, N_CHARACTERS, dtype=jnp.int32)
    hidden0 = jnp.zeros((NUM_LAYERS, BATCH_SIZE, HIDDEN_SIZE), jnp.float32)

    out, hidden1 = shakespeare_rnn_forward(tokens, hidden0, kparams)
    jax.block_until_ready((out, hidden1))

    # Correctness check against the pure-JAX reference (same shapes, tight tol).
    ref_out, ref_h = ref_forward_seq(tokens, hidden0, params)
    assert out.shape == (T, N_CHARACTERS)
    assert hidden1.shape == (NUM_LAYERS, BATCH_SIZE, HIDDEN_SIZE)
    assert ref_out.shape == out.shape
    assert ref_h.shape == hidden1.shape
    assert jnp.allclose(out, ref_out, atol=2e-3, rtol=2e-3), \
        float(jnp.max(jnp.abs(out - ref_out)))
    assert jnp.allclose(hidden1, ref_h, atol=2e-3, rtol=2e-3), \
        float(jnp.max(jnp.abs(hidden1 - ref_h)))

    print("KERNEL_OK")
</pallas_src>

<mosaic_0001>
module attributes {stable_mosaic.version = 11 : i64} {
  func.func @shakespeare_rnn_seq_kernel(%arg0: memref<8x128xf32, #tpu.memory_space<vmem>>, %arg1: memref<128x128xf32, #tpu.memory_space<vmem>>, %arg2: memref<128x128xf32, #tpu.memory_space<vmem>>, %arg3: memref<128x128xf32, #tpu.memory_space<vmem>>, %arg4: memref<1x128xf32, #tpu.memory_space<vmem>>, %arg5: memref<128x128xf32, #tpu.memory_space<vmem>>, %arg6: memref<1x128xf32, #tpu.memory_space<vmem>>, %arg7: memref<2x128xf32, #tpu.memory_space<vmem>>, %arg8: memref<8x128xf32, #tpu.memory_space<vmem>>, %arg9: memref<2x128xf32, #tpu.memory_space<vmem>>, %arg10: memref<8x128xf32, #tpu.memory_space<vmem>>) attributes {dimension_semantics = [], scalar_prefetch = 0 : i64, scratch_operands = 1 : i64, tpu.core_type = #tpu.core_type<tc>} {
    %c0 = arith.constant 0 : index
    %c0_0 = arith.constant 0 : index
    %0 = vector.load %arg4[%c0, %c0_0] : memref<1x128xf32, #tpu.memory_space<vmem>>, vector<1x128xf32>
    %c0_1 = arith.constant 0 : index
    %c0_2 = arith.constant 0 : index
    %1 = vector.load %arg7[%c0_1, %c0_2] : memref<2x128xf32, #tpu.memory_space<vmem>>, vector<1x128xf32>
    %c1 = arith.constant 1 : index
    %c0_3 = arith.constant 0 : index
    %2 = vector.load %arg7[%c1, %c0_3] : memref<2x128xf32, #tpu.memory_space<vmem>>, vector<1x128xf32>
    %c0_i32 = arith.constant 0 : i32
    %c2_i32 = arith.constant 2 : i32
    %3 = arith.addi %c0_i32, %c2_i32 : i32
    %c1_i32 = arith.constant 1 : i32
    %4:2 = scf.for %arg11 = %c0_i32 to %3 step %c1_i32 iter_args(%arg12 = %1, %arg13 = %2) -> (vector<1x128xf32>, vector<1x128xf32>)  : i32 {
      %c4_i32 = arith.constant 4 : i32
      %14 = arith.muli %arg11, %c4_i32 : i32
      %c0_i32_17 = arith.constant 0 : i32
      %15 = arith.addi %14, %c0_i32_17 : i32
      %c0_18 = arith.constant 0 : index
      %c0_19 = arith.constant 0 : index
      %16 = vector.load %arg3[%c0_18, %c0_19] : memref<128x128xf32, #tpu.memory_space<vmem>>, vector<128x128xf32>
      %cst_20 = arith.constant dense<0.000000e+00> : vector<1x128xf32>
      %17 = tpu.matmul %arg13, %16, %cst_20 {dimension_numbers = #tpu.dot_dimension_numbers<[1], [0], [0], [1], [0, 0, 1, 1], [], []>} : vector<1x128xf32>, vector<128x128xf32>, vector<1x128xf32> -> vector<1x128xf32>
      %18 = arith.index_cast %15 : i32 to index
      %c0_21 = arith.constant 0 : index
      %19 = vector.load %arg0[%18, %c0_21] : memref<8x128xf32, #tpu.memory_space<vmem>>, vector<1x128xf32>
      %c0_22 = arith.constant 0 : index
      %c0_23 = arith.constant 0 : index
      %20 = vector.load %arg1[%c0_22, %c0_23] : memref<128x128xf32, #tpu.memory_space<vmem>>, vector<128x128xf32>
      %cst_24 = arith.constant dense<0.000000e+00> : vector<1x128xf32>
      %21 = tpu.matmul %arg12, %20, %cst_24 {dimension_numbers = #tpu.dot_dimension_numbers<[1], [0], [0], [1], [0, 0, 1, 1], [], []>} : vector<1x128xf32>, vector<128x128xf32>, vector<1x128xf32> -> vector<1x128xf32>
      %22 = arith.addf %19, %21 : vector<1x128xf32>
      %23 = math.tanh %22 : vector<1x128xf32>
      %c0_25 = arith.constant 0 : index
      %c0_26 = arith.constant 0 : index
      %24 = vector.load %arg2[%c0_25, %c0_26] : memref<128x128xf32, #tpu.memory_space<vmem>>, vector<128x128xf32>
      %cst_27 = arith.constant dense<0.000000e+00> : vector<1x128xf32>
      %25 = tpu.matmul %23, %24, %cst_27 {dimension_numbers = #tpu.dot_dimension_numbers<[1], [0], [0], [1], [0, 0, 1, 1], [], []>} : vector<1x128xf32>, vector<128x128xf32>, vector<1x128xf32> -> vector<1x128xf32>
      %26 = arith.addf %17, %25 : vector<1x128xf32>
      %27 = arith.addf %26, %0 : vector<1x128xf32>
      %28 = math.tanh %27 : vector<1x128xf32>
      %29 = arith.index_cast %15 : i32 to index
      %c0_28 = arith.constant 0 : index
      %30 = vector.load %arg10[%29, %c0_28] : memref<8x128xf32, #tpu.memory_space<vmem>>, vector<1x128xf32>
      tpu.vector_store %arg10[%29, %c0_28], %28 {strides = array<i32>} : memref<8x128xf32, #tpu.memory_space<vmem>>, vector<1x128xf32>,
      %c1_i32_29 = arith.constant 1 : i32
      %31 = arith.addi %14, %c1_i32_29 : i32
      %c0_30 = arith.constant 0 : index
      %c0_31 = arith.constant 0 : index
      %32 = vector.load %arg3[%c0_30, %c0_31] : memref<128x128xf32, #tpu.memory_space<vmem>>, vector<128x128xf32>
      %cst_32 = arith.constant dense<0.000000e+00> : vector<1x128xf32>
      %33 = tpu.matmul %28, %32, %cst_32 {dimension_numbers = #tpu.dot_dimension_numbers<[1], [0], [0], [1], [0, 0, 1, 1], [], []>} : vector<1x128xf32>, vector<128x128xf32>, vector<1x128xf32> -> vector<1x128xf32>
      %34 = arith.index_cast %31 : i32 to index
      %c0_33 = arith.constant 0 : index
      %35 = vector.load %arg0[%34, %c0_33] : memref<8x128xf32, #tpu.memory_space<vmem>>, vector<1x128xf32>
      %c0_34 = arith.constant 0 : index
      %c0_35 = arith.constant 0 : index
      %36 = vector.load %arg1[%c0_34, %c0_35] : memref<128x128xf32, #tpu.memory_space<vmem>>, vector<128x128xf32>
      %cst_36 = arith.constant dense<0.000000e+00> : vector<1x128xf32>
      %37 = tpu.matmul %23, %36, %cst_36 {dimension_numbers = #tpu.dot_dimension_numbers<[1], [0], [0], [1], [0, 0, 1, 1], [], []>} : vector<1x128xf32>, vector<128x128xf32>, vector<1x128xf32> -> vector<1x128xf32>
      %38 = arith.addf %35, %37 : vector<1x128xf32>
      %39 = math.tanh %38 : vector<1x128xf32>
      %c0_37 = arith.constant 0 : index
      %c0_38 = arith.constant 0 : index
      %40 = vector.load %arg2[%c0_37, %c0_38] : memref<128x128xf32, #tpu.memory_space<vmem>>, vector<128x128xf32>
      %cst_39 = arith.constant dense<0.000000e+00> : vector<1x128xf32>
      %41 = tpu.matmul %39, %40, %cst_39 {dimension_numbers = #tpu.dot_dimension_numbers<[1], [0], [0], [1], [0, 0, 1, 1], [], []>} : vector<1x128xf32>, vector<128x128xf32>, vector<1x128xf32> -> vector<1x128xf32>
      %42 = arith.addf %33, %41 : vector<1x128xf32>
      %43 = arith.addf %42, %0 : vector<1x128xf32>
      %44 = math.tanh %43 : vector<1x128xf32>
      %45 = arith.index_cast %31 : i32 to index
      %c0_40 = arith.constant 0 : index
      %46 = vector.load %arg10[%45, %c0_40] : memref<8x128xf32, #tpu.memory_space<vmem>>, vector<1x128xf32>
      tpu.vector_store %arg10[%45, %c0_40], %44 {strides = array<i32>} : memref<8x128xf32, #tpu.memory_space<vmem>>, vector<1x128xf32>,
      %c2_i32_41 = arith.constant 2 : i32
      %47 = arith.addi %14, %c2_i32_41 : i32
      %c0_42 = arith.constant 0 : index
      %c0_43 = arith.constant 0 : index
      %48 = vector.load %arg3[%c0_42, %c0_43] : memref<128x128xf32, #tpu.memory_space<vmem>>, vector<128x128xf32>
      %cst_44 = arith.constant dense<0.000000e+00> : vector<1x128xf32>
      %49 = tpu.matmul %44, %48, %cst_44 {dimension_numbers = #tpu.dot_dimension_numbers<[1], [0], [0], [1], [0, 0, 1, 1], [], []>} : vector<1x128xf32>, vector<128x128xf32>, vector<1x128xf32> -> vector<1x128xf32>
      %50 = arith.index_cast %47 : i32 to index
      %c0_45 = arith.constant 0 : index
      %51 = vector.load %arg0[%50, %c0_45] : memref<8x128xf32, #tpu.memory_space<vmem>>, vector<1x128xf32>
      %c0_46 = arith.constant 0 : index
      %c0_47 = arith.constant 0 : index
      %52 = vector.load %arg1[%c0_46, %c0_47] : memref<128x128xf32, #tpu.memory_space<vmem>>, vector<128x128xf32>
      %cst_48 = arith.constant dense<0.000000e+00> : vector<1x128xf32>
      %53 = tpu.matmul %39, %52, %cst_48 {dimension_numbers = #tpu.dot_dimension_numbers<[1], [0], [0], [1], [0, 0, 1, 1], [], []>} : vector<1x128xf32>, vector<128x128xf32>, vector<1x128xf32> -> vector<1x128xf32>
      %54 = arith.addf %51, %53 : vector<1x128xf32>
      %55 = math.tanh %54 : vector<1x128xf32>
      %c0_49 = arith.constant 0 : index
      %c0_50 = arith.constant 0 : index
      %56 = vector.load %arg2[%c0_49, %c0_50] : memref<128x128xf32, #tpu.memory_space<vmem>>, vector<128x128xf32>
      %cst_51 = arith.constant dense<0.000000e+00> : vector<1x128xf32>
      %57 = tpu.matmul %55, %56, %cst_51 {dimension_numbers = #tpu.dot_dimension_numbers<[1], [0], [0], [1], [0, 0, 1, 1], [], []>} : vector<1x128xf32>, vector<128x128xf32>, vector<1x128xf32> -> vector<1x128xf32>
      %58 = arith.addf %49, %57 : vector<1x128xf32>
      %59 = arith.addf %58, %0 : vector<1x128xf32>
      %60 = math.tanh %59 : vector<1x128xf32>
      %61 = arith.index_cast %47 : i32 to index
      %c0_52 = arith.constant 0 : index
      %62 = vector.load %arg10[%61, %c0_52] : memref<8x128xf32, #tpu.memory_space<vmem>>, vector<1x128xf32>
      tpu.vector_store %arg10[%61, %c0_52], %60 {strides = array<i32>} : memref<8x128xf32, #tpu.memory_space<vmem>>, vector<1x128xf32>,
      %c3_i32 = arith.constant 3 : i32
      %63 = arith.addi %14, %c3_i32 : i32
      %c0_53 = arith.constant 0 : index
      %c0_54 = arith.constant 0 : index
      %64 = vector.load %arg3[%c0_53, %c0_54] : memref<128x128xf32, #tpu.memory_space<vmem>>, vector<128x128xf32>
      %cst_55 = arith.constant dense<0.000000e+00> : vector<1x128xf32>
      %65 = tpu.matmul %60, %64, %cst_55 {dimension_numbers = #tpu.dot_dimension_numbers<[1], [0], [0], [1], [0, 0, 1, 1], [], []>} : vector<1x128xf32>, vector<128x128xf32>, vector<1x128xf32> -> vector<1x128xf32>
      %66 = arith.index_cast %63 : i32 to index
      %c0_56 = arith.constant 0 : index
      %67 = vector.load %arg0[%66, %c0_56] : memref<8x128xf32, #tpu.memory_space<vmem>>, vector<1x128xf32>
      %c0_57 = arith.constant 0 : index
      %c0_58 = arith.constant 0 : index
      %68 = vector.load %arg1[%c0_57, %c0_58] : memref<128x128xf32, #tpu.memory_space<vmem>>, vector<128x128xf32>
      %cst_59 = arith.constant dense<0.000000e+00> : vector<1x128xf32>
      %69 = tpu.matmul %55, %68, %cst_59 {dimension_numbers = #tpu.dot_dimension_numbers<[1], [0], [0], [1], [0, 0, 1, 1], [], []>} : vector<1x128xf32>, vector<128x128xf32>, vector<1x128xf32> -> vector<1x128xf32>
      %70 = arith.addf %67, %69 : vector<1x128xf32>
      %71 = math.tanh %70 : vector<1x128xf32>
      %c0_60 = arith.constant 0 : index
      %c0_61 = arith.constant 0 : index
      %72 = vector.load %arg2[%c0_60, %c0_61] : memref<128x128xf32, #tpu.memory_space<vmem>>, vector<128x128xf32>
      %cst_62 = arith.constant dense<0.000000e+00> : vector<1x128xf32>
      %73 = tpu.matmul %71, %72, %cst_62 {dimension_numbers = #tpu.dot_dimension_numbers<[1], [0], [0], [1], [0, 0, 1, 1], [], []>} : vector<1x128xf32>, vector<128x128xf32>, vector<1x128xf32> -> vector<1x128xf32>
      %74 = arith.addf %65, %73 : vector<1x128xf32>
      %75 = arith.addf %74, %0 : vector<1x128xf32>
      %76 = math.tanh %75 : vector<1x128xf32>
      %77 = arith.index_cast %63 : i32 to index
      %c0_63 = arith.constant 0 : index
      %78 = vector.load %arg10[%77, %c0_63] : memref<8x128xf32, #tpu.memory_space<vmem>>, vector<1x128xf32>
      tpu.vector_store %arg10[%77, %c0_63], %76 {strides = array<i32>} : memref<8x128xf32, #tpu.memory_space<vmem>>, vector<1x128xf32>,
      scf.yield %71, %76 : vector<1x128xf32>, vector<1x128xf32>
    }
    %c2_i32_4 = arith.constant 2 : i32
    %c0_5 = arith.constant 0 : index
    %c0_6 = arith.constant 0 : index
    %5 = vector.load %arg9[%c0_5, %c0_6] : memref<2x128xf32, #tpu.memory_space<vmem>>, vector<1x128xf32>
    tpu.vector_store %arg9[%c0_5, %c0_6], %4#0 {strides = array<i32>} : memref<2x128xf32, #tpu.memory_space<vmem>>, vector<1x128xf32>,
    %c1_7 = arith.constant 1 : index
    %c0_8 = arith.constant 0 : index
    %6 = vector.load %arg9[%c1_7, %c0_8] : memref<2x128xf32, #tpu.memory_space<vmem>>, vector<1x128xf32>
    tpu.vector_store %arg9[%c1_7, %c0_8], %4#1 {strides = array<i32>} : memref<2x128xf32, #tpu.memory_space<vmem>>, vector<1x128xf32>,
    %c0_9 = arith.constant 0 : index
    %c0_10 = arith.constant 0 : index
    %7 = vector.load %arg10[%c0_9, %c0_10] : memref<8x128xf32, #tpu.memory_space<vmem>>, vector<8x128xf32>
    %c0_11 = arith.constant 0 : index
    %c0_12 = arith.constant 0 : index
    %8 = vector.load %arg5[%c0_11, %c0_12] : memref<128x128xf32, #tpu.memory_space<vmem>>, vector<128x128xf32>
    %cst = arith.constant dense<0.000000e+00> : vector<8x128xf32>
    %9 = tpu.matmul %7, %8, %cst {dimension_numbers = #tpu.dot_dimension_numbers<[1], [0], [0], [1], [0, 0, 1, 1], [], []>} : vector<8x128xf32>, vector<128x128xf32>, vector<8x128xf32> -> vector<8x128xf32>
    %c0_13 = arith.constant 0 : index
    %c0_14 = arith.constant 0 : index
    %10 = vector.load %arg6[%c0_13, %c0_14] : memref<1x128xf32, #tpu.memory_space<vmem>>, vector<1x128xf32>
    %11 = vector.broadcast %10 : vector<1x128xf32> to vector<8x128xf32>
    %12 = arith.addf %9, %11 : vector<8x128xf32>
    %c0_15 = arith.constant 0 : index
    %c0_16 = arith.constant 0 : index
    %13 = vector.load %arg8[%c0_15, %c0_16] : memref<8x128xf32, #tpu.memory_space<vmem>>, vector<8x128xf32>
    tpu.vector_store %arg8[%c0_15, %c0_16], %12 {strides = array<i32>} : memref<8x128xf32, #tpu.memory_space<vmem>>, vector<8x128xf32>,
    return
  }
}

</mosaic_0001>

<llo_original>
// kernel: shakespeare_rnn_forward.1
$region0: #{shakespeare_rnn_forward.1}
  #allocation0 [shape = 'u32[]', space=smem, size = 0x4, offset = 0x4, fixed_abs, tag = 'smem constant byte address 0x4 - core index']
  #allocation1 [shape = 'u32[72,128]{1,0:T(1,128)}', space=vmem, size = 0x9000, scoped, tag = 'internal scratch']
  #allocation2 [shape = 'f32[8,128]{1,0:T(8,128)}', space=vmem, size = 0x1000, scoped, tag = 'scratch operand']
  %s0 = inlined_call_operand.vmem [shape: f32[8,128], index: 0, kind: input, shape index: {}]
  %s1 = inlined_call_operand.hbm [shape: f32[128,128], index: 1, kind: input, shape index: {}]
  %s2 = inlined_call_operand.hbm [shape: f32[128,128], index: 2, kind: input, shape index: {}]
  %s3 = inlined_call_operand.hbm [shape: f32[128,128], index: 3, kind: input, shape index: {}]
  %s4 = inlined_call_operand.vmem [shape: f32[1,128], index: 4, kind: input, shape index: {}]
  %s5 = inlined_call_operand.hbm [shape: f32[128,128], index: 5, kind: input, shape index: {}]
  %s6 = inlined_call_operand.vmem [shape: f32[1,128], index: 6, kind: input, shape index: {}]
  %s7 = inlined_call_operand.vmem [shape: f32[2,128], index: 7, kind: input, shape index: {}, may-alias: {7,9}]
  %s8 = inlined_call_operand.hbm [shape: f32[8,128], index: 8, kind: output, shape index: {0}]
  %s9 = inlined_call_operand.vmem [shape: f32[2,128], index: 9, kind: output, shape index: {1}, may-alias: {7,9}]
  %10 = xla_tuple %s8, %s9
  %s11 = sld [smem:[#allocation0]]
  $region73: #{shakespeare_rnn_forward.1} parent=0
    _
  %s13 = ssub.s32 1, %s11
  %s14 = scalar_select 0, %s13, %s11
  $region1: #{shakespeare_rnn_forward.1} parent=0
    #allocation3 [shape = 'u8[65536]{0}', space=vmem, size = 0x10000, scoped, tag = 'input window, operand 1, single buffered']
    #allocation4 [shape = 's32[1]{0}', space=sflag, size = 0x4, scoped, tag = 'scoped memory for shakespeare_rnn_forward.1']
    #allocation5 [shape = 's32[1]{0}', space=sflag, size = 0x4, scoped, tag = 'scoped memory for shakespeare_rnn_forward.1']
    #allocation6 [shape = 'u8[65536]{0}', space=vmem, size = 0x10000, scoped, tag = 'input window, operand 2, single buffered']
    #allocation7 [shape = 's32[1]{0}', space=sflag, size = 0x4, scoped, tag = 'scoped memory for shakespeare_rnn_forward.1']
    #allocation8 [shape = 'u8[65536]{0}', space=vmem, size = 0x10000, scoped, tag = 'input window, operand 3, single buffered']
    #allocation9 [shape = 'u8[65536]{0}', space=vmem, size = 0x10000, scoped, tag = 'input window, operand 5, single buffered']
    #allocation10 [shape = 's32[1]{0}', space=sflag, size = 0x4, scoped, tag = 'scoped memory for shakespeare_rnn_forward.1']
    #allocation11 [shape = 'u8[4096]{0}', space=vmem, size = 0x1000, scoped, tag = 'output window, operand 0, single buffered']
    %15 = vsyncpa [#allocation4], 0
    %16 = vsyncpa [#allocation7], 0
    %17 = vsyncpa [#allocation10], 0
    %18 = vsyncpa [#allocation5], 0
    // Predicated region
    $region2: #{shakespeare_rnn_forward.1} parent=1 // pred_check
      _
    $region3: #{shakespeare_rnn_forward.1} parent=1 // pred_check_branch
      %20 = sbr.rel (0) target = $region5
    $region4: #{shakespeare_rnn_forward.1} parent=1 // pred_region
      _
    $region5: #{shakespeare_rnn_forward.1} parent=1 // pred_fallthru
      _
    // Predicated region
    $region6: #{shakespeare_rnn_forward.1} parent=1 // pred_check
      _
    $region7: #{shakespeare_rnn_forward.1} parent=1 // pred_check_branch
      %22 = sbr.rel (0) target = $region9
    $region8: #{shakespeare_rnn_forward.1} parent=1 // pred_region
      %24 = vsyncadd [#allocation4], 0
      %s25 = sshll.u32 %s1, 4
      %s26 = int_to_ptr.hbm [resolvable:$true] %s25
      %s27 = sshll.u32 [#allocation3], 4
      %s28 = int_to_ptr.vmem [resolvable:$true] %s27
      %33 = dma.hbm_to_vmem [thread:$0]  %s26, 2048, %s28, [#allocation4], 128, 128, 8
    $region9: #{shakespeare_rnn_forward.1} parent=1 // pred_fallthru
      _
    // Predicated region
    $region10: #{shakespeare_rnn_forward.1} parent=1 // pred_check
      _
    $region11: #{shakespeare_rnn_forward.1} parent=1 // pred_check_branch
      %35 = sbr.rel (0) target = $region13
    $region12: #{shakespeare_rnn_forward.1} parent=1 // pred_region
      %37 = vsyncadd [#allocation7], 0
      %s38 = sshll.u32 %s2, 4
      %s39 = int_to_ptr.hbm [resolvable:$true] %s38
      %s40 = sshll.u32 [#allocation6], 4
      %s41 = int_to_ptr.vmem [resolvable:$true] %s40
      %46 = dma.hbm_to_vmem [thread:$0]  %s39, 2048, %s41, [#allocation7], 128, 128, 8
    $region13: #{shakespeare_rnn_forward.1} parent=1 // pred_fallthru
      _
    // Predicated region
    $region14: #{shakespeare_rnn_forward.1} parent=1 // pred_check
      _
    $region15: #{shakespeare_rnn_forward.1} parent=1 // pred_check_branch
      %48 = sbr.rel (0) target = $region17
    $region16: #{shakespeare_rnn_forward.1} parent=1 // pred_region
      %50 = vsyncadd [#allocation7], 0
      %s51 = sshll.u32 %s3, 4
      %s52 = int_to_ptr.hbm [resolvable:$true] %s51
      %s53 = sshll.u32 [#allocation8], 4
      %s54 = int_to_ptr.vmem [resolvable:$true] %s53
      %59 = dma.hbm_to_vmem [thread:$0]  %s52, 2048, %s54, [#allocation7], 128, 128, 8
    $region17: #{shakespeare_rnn_forward.1} parent=1 // pred_fallthru
      _
    // Predicated region
    $region18: #{shakespeare_rnn_forward.1} parent=1 // pred_check
      _
    $region19: #{shakespeare_rnn_forward.1} parent=1 // pred_check_branch
      %61 = sbr.rel (0) target = $region21
    $region20: #{shakespeare_rnn_forward.1} parent=1 // pred_region
      _
    $region21: #{shakespeare_rnn_forward.1} parent=1 // pred_fallthru
      _
    // Predicated region
    $region22: #{shakespeare_rnn_forward.1} parent=1 // pred_check
      _
    $region23: #{shakespeare_rnn_forward.1} parent=1 // pred_check_branch
      %63 = sbr.rel (0) target = $region25
    $region24: #{shakespeare_rnn_forward.1} parent=1 // pred_region
      %65 = vsyncadd [#allocation10], 0
      %s66 = sshll.u32 %s5, 4
      %s67 = int_to_ptr.hbm [resolvable:$true] %s66
      %s68 = sshll.u32 [#allocation9], 4
      %s69 = int_to_ptr.vmem [resolvable:$true] %s68
      %74 = dma.hbm_to_vmem [thread:$0]  %s67, 2048, %s69, [#allocation10], 128, 128, 8
    $region25: #{shakespeare_rnn_forward.1} parent=1 // pred_fallthru
      _
    // Predicated region
    $region26: #{shakespeare_rnn_forward.1} parent=1 // pred_check
      _
    $region27: #{shakespeare_rnn_forward.1} parent=1 // pred_check_branch
      %76 = sbr.rel (0) target = $region29
    $region28: #{shakespeare_rnn_forward.1} parent=1 // pred_region
      _
    $region29: #{shakespeare_rnn_forward.1} parent=1 // pred_fallthru
      _
    // Predicated region
    $region30: #{shakespeare_rnn_forward.1} parent=1 // pred_check
      _
    $region31: #{shakespeare_rnn_forward.1} parent=1 // pred_check_branch
      %78 = sbr.rel (0) target = $region33
    $region32: #{shakespeare_rnn_forward.1} parent=1 // pred_region
      _
    $region33: #{shakespeare_rnn_forward.1} parent=1 // pred_fallthru
      _
    // Predicated region
    $region34: #{shakespeare_rnn_forward.1} parent=1 // pred_check
      _
    $region35: #{shakespeare_rnn_forward.1} parent=1 // pred_check_branch
      %80 = sbr.rel (0) target = $region37
    $region36: #{shakespeare_rnn_forward.1} parent=1 // pred_region
      %82 = dma.done [#allocation4], 2048
    $region37: #{shakespeare_rnn_forward.1} parent=1 // pred_fallthru
      _
    // Predicated region
    $region38: #{shakespeare_rnn_forward.1} parent=1 // pred_check
      _
    $region39: #{shakespeare_rnn_forward.1} parent=1 // pred_check_branch
      %84 = sbr.rel (0) target = $region41
    $region40: #{shakespeare_rnn_forward.1} parent=1 // pred_region
      %86 = dma.done [#allocation7], 2048
    $region41: #{shakespeare_rnn_forward.1} parent=1 // pred_fallthru
      _
    // Predicated region
    $region42: #{shakespeare_rnn_forward.1} parent=1 // pred_check
      _
    $region43: #{shakespeare_rnn_forward.1} parent=1 // pred_check_branch
      %88 = sbr.rel (0) target = $region45
    $region44: #{shakespeare_rnn_forward.1} parent=1 // pred_region
      %90 = dma.done [#allocation7], 2048
    $region45: #{shakespeare_rnn_forward.1} parent=1 // pred_fallthru
      _
    // Predicated region
    $region46: #{shakespeare_rnn_forward.1} parent=1 // pred_check
      _
    $region47: #{shakespeare_rnn_forward.1} parent=1 // pred_check_branch
      %92 = sbr.rel (0) target = $region49
    $region48: #{shakespeare_rnn_forward.1} parent=1 // pred_region
      %94 = dma.done [#allocation10], 2048
    $region49: #{shakespeare_rnn_forward.1} parent=1 // pred_fallthru
      _
    %v95 = vld [vmem:[%s4] sm:$0x1]
    %v96 = vld [vmem:[%s7] sm:$0x1]
    %v97 = vld [vmem:[%s7 + $0x1] sm:$0x1]
    loop: start=0, step=1, limit=2
    $region50: #{shakespeare_rnn_forward.1} parent=1 // loop_pre_header
      _
    $region51: #{shakespeare_rnn_forward.1} parent=1 // loop_header
      %s99 = sphi 0, %s103
      %p100 = scmp.ge.s32.totalorder %s99, 2
      %v104 = vphi %v96, %v513
      %v105 = vphi %v97, %v571
    $region52: #{shakespeare_rnn_forward.1} parent=1 // loop_header_branch
      %102 = sbr.rel (%p100) target = $region56
    $region53: #{shakespeare_rnn_forward.1} parent=1 // loop_body
      %s106 = smul.u32 %s99, 4
      %v107 = vld [vmem:[#allocation8] sm:$0xff]
      %v108 = vld [vmem:[#allocation8 + $0x8] sm:$0xff]
      %v109 = vld [vmem:[#allocation8 + $0x10] sm:$0xff]
      %v110 = vld [vmem:[#allocation8 + $0x18] sm:$0xff]
      %v111 = vld [vmem:[#allocation8 + $0x20] sm:$0xff]
      %v112 = vld [vmem:[#allocation8 + $0x28] sm:$0xff]
      %v113 = vld [vmem:[#allocation8 + $0x30] sm:$0xff]
      %v114 = vld [vmem:[#allocation8 + $0x38] sm:$0xff]
      %v115 = vld [vmem:[#allocation8 + $0x40] sm:$0xff]
      %v116 = vld [vmem:[#allocation8 + $0x48] sm:$0xff]
      %v117 = vld [vmem:[#allocation8 + $0x50] sm:$0xff]
      %v118 = vld [vmem:[#allocation8 + $0x58] sm:$0xff]
      %v119 = vld [vmem:[#allocation8 + $0x60] sm:$0xff]
      %v120 = vld [vmem:[#allocation8 + $0x68] sm:$0xff]
      %v121 = vld [vmem:[#allocation8 + $0x70] sm:$0xff]
      %v122 = vld [vmem:[#allocation8 + $0x78] sm:$0xff]
      %s123 = scalar_lea.vmem %s0, %s106
      %v124 = vld [vmem:[%s123] sm:$0x1]
      %v125 = vld [vmem:[#allocation3] sm:$0xff]
      %v126 = vld [vmem:[#allocation3 + $0x8] sm:$0xff]
      %v127 = vld [vmem:[#allocation3 + $0x10] sm:$0xff]
      %v128 = vld [vmem:[#allocation3 + $0x18] sm:$0xff]
      %v129 = vld [vmem:[#allocation3 + $0x20] sm:$0xff]
      %v130 = vld [vmem:[#allocation3 + $0x28] sm:$0xff]
      %v131 = vld [vmem:[#allocation3 + $0x30] sm:$0xff]
      %v132 = vld [vmem:[#allocation3 + $0x38] sm:$0xff]
      %v133 = vld [vmem:[#allocation3 + $0x40] sm:$0xff]
      %v134 = vld [vmem:[#allocation3 + $0x48] sm:$0xff]
      %v135 = vld [vmem:[#allocation3 + $0x50] sm:$0xff]
      %v136 = vld [vmem:[#allocation3 + $0x58] sm:$0xff]
      %v137 = vld [vmem:[#allocation3 + $0x60] sm:$0xff]
      %v138 = vld [vmem:[#allocation3 + $0x68] sm:$0xff]
      %v139 = vld [vmem:[#allocation3 + $0x70] sm:$0xff]
      %v140 = vld [vmem:[#allocation3 + $0x78] sm:$0xff]
      %141 = vmatpush.msra.mxu0 %v140
      %142 = vmatpush.msra.mxu0 %v139
      %143 = vmatpush.msra.mxu0 %v138
      %144 = vmatpush.msra.mxu0 %v137
      %145 = vmatpush.msra.mxu0 %v136
      %146 = vmatpush.msra.mxu0 %v135
      %147 = vmatpush.msra.mxu0 %v134
      %148 = vmatpush.msra.mxu0 %v133
      %149 = vmatpush.msra.mxu0 %v132
      %150 = vmatpush.msra.mxu0 %v131
      %151 = vmatpush.msra.mxu0 %v130
      %152 = vmatpush.msra.mxu0 %v129
      %153 = vmatpush.msra.mxu0 %v128
      %154 = vmatpush.msra.mxu0 %v127
      %155 = vmatpush.msra.mxu0 %v126
      %156 = vmatpush.msra.mxu0 %v125
      %157 = vmatmul.f32.gmra.mxu0 %v104
      %v158 = vpop.f32.mrf.mxu0
      %v159 = vadd.f32 0.0, %v158
      %160 = vdwg.mxu0
      %v161 = vadd.f32 %v124, %v159
      %v162 = vtanh.pop %v161
      %v163 = vld [vmem:[#allocation6] sm:$0xff]
      %v164 = vld [vmem:[#allocation6 + $0x8] sm:$0xff]
      %v165 = vld [vmem:[#allocation6 + $0x10] sm:$0xff]
      %v166 = vld [vmem:[#allocation6 + $0x18] sm:$0xff]
      %v167 = vld [vmem:[#allocation6 + $0x20] sm:$0xff]
      %v168 = vld [vmem:[#allocation6 + $0x28] sm:$0xff]
      %v169 = vld [vmem:[#allocation6 + $0x30] sm:$0xff]
      %v170 = vld [vmem:[#allocation6 + $0x38] sm:$0xff]
      %v171 = vld [vmem:[#allocation6 + $0x40] sm:$0xff]
      %v172 = vld [vmem:[#allocation6 + $0x48] sm:$0xff]
      %v173 = vld [vmem:[#allocation6 + $0x50] sm:$0xff]
      %v174 = vld [vmem:[#allocation6 + $0x58] sm:$0xff]
      %v175 = vld [vmem:[#allocation6 + $0x60] sm:$0xff]
      %v176 = vld [vmem:[#allocation6 + $0x68] sm:$0xff]
      %v177 = vld [vmem:[#allocation6 + $0x70] sm:$0xff]
      %v178 = vld [vmem:[#allocation6 + $0x78] sm:$0xff]
      %179 = vmatpush.msra.mxu0 %v178
      %180 = vmatpush.msra.mxu0 %v177
      %181 = vmatpush.msra.mxu0 %v176
      %182 = vmatpush.msra.mxu0 %v175
      %183 = vmatpush.msra.mxu0 %v174
      %184 = vmatpush.msra.mxu0 %v173
      %185 = vmatpush.msra.mxu0 %v172
      %186 = vmatpush.msra.mxu0 %v171
      %187 = vmatpush.msra.mxu0 %v170
      %188 = vmatpush.msra.mxu0 %v169
      %189 = vmatpush.msra.mxu0 %v168
      %190 = vmatpush.msra.mxu0 %v167
      %191 = vmatpush.msra.mxu0 %v166
      %192 = vmatpush.msra.mxu0 %v165
      %193 = vmatpush.msra.mxu0 %v164
      %194 = vmatpush.msra.mxu0 %v163
      %195 = vmatmul.f32.gmra.mxu0 %v162
      %v196 = vpop.f32.mrf.mxu0
      %v197 = vadd.f32 0.0, %v196
      %198 = vdwg.mxu0
      %199 = vmatpush.msra.mxu0 %v122
      %200 = vmatpush.msra.mxu0 %v121
      %201 = vmatpush.msra.mxu0 %v120
      %202 = vmatpush.msra.mxu0 %v119
      %203 = vmatpush.msra.mxu0 %v118
      %204 = vmatpush.msra.mxu0 %v117
      %205 = vmatpush.msra.mxu0 %v116
      %206 = vmatpush.msra.mxu0 %v115
      %207 = vmatpush.msra.mxu0 %v114
      %208 = vmatpush.msra.mxu0 %v113
      %209 = vmatpush.msra.mxu0 %v112
      %210 = vmatpush.msra.mxu0 %v111
      %211 = vmatpush.msra.mxu0 %v110
      %212 = vmatpush.msra.mxu0 %v109
      %213 = vmatpush.msra.mxu0 %v108
      %214 = vmatpush.msra.mxu0 %v107
      %215 = vmatmul.f32.gmra.mxu0 %v105
      %v216 = vpop.f32.mrf.mxu0
      %v217 = vadd.f32 %v197, %v216
      %218 = vdwg.mxu0
      %v219 = vadd.f32 %v217, %v95
      %v220 = vtanh.pop %v219
      %s221 = scalar_lea.vmem [#allocation2], %s106
      %222 = vst [vmem:[%s221] sm:$0x1] %v220
      %s223 = sadd.s32 %s106, 1
      %v224 = vld [vmem:[#allocation8] sm:$0xff]
      %v225 = vld [vmem:[#allocation8 + $0x8] sm:$0xff]
      %v226 = vld [vmem:[#allocation8 + $0x10] sm:$0xff]
      %v227 = vld [vmem:[#allocation8 + $0x18] sm:$0xff]
      %v228 = vld [vmem:[#allocation8 + $0x20] sm:$0xff]
      %v229 = vld [vmem:[#allocation8 + $0x28] sm:$0xff]
      %v230 = vld [vmem:[#allocation8 + $0x30] sm:$0xff]
      %v231 = vld [vmem:[#allocation8 + $0x38] sm:$0xff]
      %v232 = vld [vmem:[#allocation8 + $0x40] sm:$0xff]
      %v233 = vld [vmem:[#allocation8 + $0x48] sm:$0xff]
      %v234 = vld [vmem:[#allocation8 + $0x50] sm:$0xff]
      %v235 = vld [vmem:[#allocation8 + $0x58] sm:$0xff]
      %v236 = vld [vmem:[#allocation8 + $0x60] sm:$0xff]
      %v237 = vld [vmem:[#allocation8 + $0x68] sm:$0xff]
      %v238 = vld [vmem:[#allocation8 + $0x70] sm:$0xff]
      %v239 = vld [vmem:[#allocation8 + $0x78] sm:$0xff]
      %s240 = scalar_lea.vmem %s0, %s223
      %v241 = vld [vmem:[%s240] sm:$0x1]
      %v242 = vld [vmem:[#allocation3] sm:$0xff]
      %v243 = vld [vmem:[#allocation3 + $0x8] sm:$0xff]
      %v244 = vld [vmem:[#allocation3 + $0x10] sm:$0xff]
      %v245 = vld [vmem:[#allocation3 + $0x18] sm:$0xff]
      %v246 = vld [vmem:[#allocation3 + $0x20] sm:$0xff]
      %v247 = vld [vmem:[#allocation3 + $0x28] sm:$0xff]
      %v248 = vld [vmem:[#allocation3 + $0x30] sm:$0xff]
      %v249 = vld [vmem:[#allocation3 + $0x38] sm:$0xff]
      %v250 = vld [vmem:[#allocation3 + $0x40] sm:$0xff]
      %v251 = vld [vmem:[#allocation3 + $0x48] sm:$0xff]
      %v252 = vld [vmem:[#allocation3 + $0x50] sm:$0xff]
      %v253 = vld [vmem:[#allocation3 + $0x58] sm:$0xff]
      %v254 = vld [vmem:[#allocation3 + $0x60] sm:$0xff]
      %v255 = vld [vmem:[#allocation3 + $0x68] sm:$0xff]
      %v256 = vld [vmem:[#allocation3 + $0x70] sm:$0xff]
      %v257 = vld [vmem:[#allocation3 + $0x78] sm:$0xff]
      %258 = vmatpush.msra.mxu0 %v257
      %259 = vmatpush.msra.mxu0 %v256
      %260 = vmatpush.msra.mxu0 %v255
      %261 = vmatpush.msra.mxu0 %v254
      %262 = vmatpush.msra.mxu0 %v253
      %263 = vmatpush.msra.mxu0 %v252
      %264 = vmatpush.msra.mxu0 %v251
      %265 = vmatpush.msra.mxu0 %v250
      %266 = vmatpush.msra.mxu0 %v249
      %267 = vmatpush.msra.mxu0 %v248
      %268 = vmatpush.msra.mxu0 %v247
      %269 = vmatpush.msra.mxu0 %v246
      %270 = vmatpush.msra.mxu0 %v245
      %271 = vmatpush.msra.mxu0 %v244
      %272 = vmatpush.msra.mxu0 %v243
      %273 = vmatpush.msra.mxu0 %v242
      %274 = vmatmul.f32.gmra.mxu0 %v162
      %v275 = vpop.f32.mrf.mxu0
      %v276 = vadd.f32 0.0, %v275
      %277 = vdwg.mxu0
      %v278 = vadd.f32 %v241, %v276
      %v279 = vtanh.pop %v278
      %v280 = vld [vmem:[#allocation6] sm:$0xff]
      %v281 = vld [vmem:[#allocation6 + $0x8] sm:$0xff]
      %v282 = vld [vmem:[#allocation6 + $0x10] sm:$0xff]
      %v283 = vld [vmem:[#allocation6 + $0x18] sm:$0xff]
      %v284 = vld [vmem:[#allocation6 + $0x20] sm:$0xff]
      %v285 = vld [vmem:[#allocation6 + $0x28] sm:$0xff]
      %v286 = vld [vmem:[#allocation6 + $0x30] sm:$0xff]
      %v287 = vld [vmem:[#allocation6 + $0x38] sm:$0xff]
      %v288 = vld [vmem:[#allocation6 + $0x40] sm:$0xff]
      %v289 = vld [vmem:[#allocation6 + $0x48] sm:$0xff]
      %v290 = vld [vmem:[#allocation6 + $0x50] sm:$0xff]
      %v291 = vld [vmem:[#allocation6 + $0x58] sm:$0xff]
      %v292 = vld [vmem:[#allocation6 + $0x60] sm:$0xff]
      %v293 = vld [vmem:[#allocation6 + $0x68] sm:$0xff]
      %v294 = vld [vmem:[#allocation6 + $0x70] sm:$0xff]
      %v295 = vld [vmem:[#allocation6 + $0x78] sm:$0xff]
      %296 = vmatpush.msra.mxu0 %v295
      %297 = vmatpush.msra.mxu0 %v294
      %298 = vmatpush.msra.mxu0 %v293
      %299 = vmatpush.msra.mxu0 %v292
      %300 = vmatpush.msra.mxu0 %v291
      %301 = vmatpush.msra.mxu0 %v290
      %302 = vmatpush.msra.mxu0 %v289
      %303 = vmatpush.msra.mxu0 %v288
      %304 = vmatpush.msra.mxu0 %v287
      %305 = vmatpush.msra.mxu0 %v286
      %306 = vmatpush.msra.mxu0 %v285
      %307 = vmatpush.msra.mxu0 %v284
      %308 = vmatpush.msra.mxu0 %v283
      %309 = vmatpush.msra.mxu0 %v282
      %310 = vmatpush.msra.mxu0 %v281
      %311 = vmatpush.msra.mxu0 %v280
      %312 = vmatmul.f32.gmra.mxu0 %v279
      %v313 = vpop.f32.mrf.mxu0
      %v314 = vadd.f32 0.0, %v313
      %315 = vdwg.mxu0
      %316 = vmatpush.msra.mxu0 %v239
      %317 = vmatpush.msra.mxu0 %v238
      %318 = vmatpush.msra.mxu0 %v237
      %319 = vmatpush.msra.mxu0 %v236
      %320 = vmatpush.msra.mxu0 %v235
      %321 = vmatpush.msra.mxu0 %v234
      %322 = vmatpush.msra.mxu0 %v233
      %323 = vmatpush.msra.mxu0 %v232
      %324 = vmatpush.msra.mxu0 %v231
      %325 = vmatpush.msra.mxu0 %v230
      %326 = vmatpush.msra.mxu0 %v229
      %327 = vmatpush.msra.mxu0 %v228
      %328 = vmatpush.msra.mxu0 %v227
      %329 = vmatpush.msra.mxu0 %v226
      %330 = vmatpush.msra.mxu0 %v225
      %331 = vmatpush.msra.mxu0 %v224
      %332 = vmatmul.f32.gmra.mxu0 %v220
      %v333 = vpop.f32.mrf.mxu0
      %v334 = vadd.f32 %v314, %v333
      %335 = vdwg.mxu0
      %v336 = vadd.f32 %v334, %v95
      %v337 = vtanh.pop %v336
      %s338 = scalar_lea.vmem [#allocation2], %s223
      %339 = vst [vmem:[%s338] sm:$0x1] %v337
      %s340 = sadd.s32 %s106, 2
      %v341 = vld [vmem:[#allocation8] sm:$0xff]
      %v342 = vld [vmem:[#allocation8 + $0x8] sm:$0xff]
      %v343 = vld [vmem:[#allocation8 + $0x10] sm:$0xff]
      %v344 = vld [vmem:[#allocation8 + $0x18] sm:$0xff]
      %v345 = vld [vmem:[#allocation8 + $0x20] sm:$0xff]
      %v346 = vld [vmem:[#allocation8 + $0x28] sm:$0xff]
      %v347 = vld [vmem:[#allocation8 + $0x30] sm:$0xff]
      %v348 = vld [vmem:[#allocation8 + $0x38] sm:$0xff]
      %v349 = vld [vmem:[#allocation8 + $0x40] sm:$0xff]
      %v350 = vld [vmem:[#allocation8 + $0x48] sm:$0xff]
      %v351 = vld [vmem:[#allocation8 + $0x50] sm:$0xff]
      %v352 = vld [vmem:[#allocation8 + $0x58] sm:$0xff]
      %v353 = vld [vmem:[#allocation8 + $0x60] sm:$0xff]
      %v354 = vld [vmem:[#allocation8 + $0x68] sm:$0xff]
      %v355 = vld [vmem:[#allocation8 + $0x70] sm:$0xff]
      %v356 = vld [vmem:[#allocation8 + $0x78] sm:$0xff]
      %s357 = scalar_lea.vmem %s0, %s340
      %v358 = vld [vmem:[%s357] sm:$0x1]
      %v359 = vld [vmem:[#allocation3] sm:$0xff]
      %v360 = vld [vmem:[#allocation3 + $0x8] sm:$0xff]
      %v361 = vld [vmem:[#allocation3 + $0x10] sm:$0xff]
      %v362 = vld [vmem:[#allocation3 + $0x18] sm:$0xff]
      %v363 = vld [vmem:[#allocation3 + $0x20] sm:$0xff]
      %v364 = vld [vmem:[#allocation3 + $0x28] sm:$0xff]
      %v365 = vld [vmem:[#allocation3 + $0x30] sm:$0xff]
      %v366 = vld [vmem:[#allocation3 + $0x38] sm:$0xff]
      %v367 = vld [vmem:[#allocation3 + $0x40] sm:$0xff]
      %v368 = vld [vmem:[#allocation3 + $0x48] sm:$0xff]
      %v369 = vld [vmem:[#allocation3 + $0x50] sm:$0xff]
      %v370 = vld [vmem:[#allocation3 + $0x58] sm:$0xff]
      %v371 = vld [vmem:[#allocation3 + $0x60] sm:$0xff]
      %v372 = vld [vmem:[#allocation3 + $0x68] sm:$0xff]
      %v373 = vld [vmem:[#allocation3 + $0x70] sm:$0xff]
      %v374 = vld [vmem:[#allocation3 + $0x78] sm:$0xff]
      %375 = vmatpush.msra.mxu0 %v374
      %376 = vmatpush.msra.mxu0 %v373
      %377 = vmatpush.msra.mxu0 %v372
      %378 = vmatpush.msra.mxu0 %v371
      %379 = vmatpush.msra.mxu0 %v370
      %380 = vmatpush.msra.mxu0 %v369
      %381 = vmatpush.msra.mxu0 %v368
      %382 = vmatpush.msra.mxu0 %v367
      %383 = vmatpush.msra.mxu0 %v366
      %384 = vmatpush.msra.mxu0 %v365
      %385 = vmatpush.msra.mxu0 %v364
      %386 = vmatpush.msra.mxu0 %v363
      %387 = vmatpush.msra.mxu0 %v362
      %388 = vmatpush.msra.mxu0 %v361
      %389 = vmatpush.msra.mxu0 %v360
      %390 = vmatpush.msra.mxu0 %v359
      %391 = vmatmul.f32.gmra.mxu0 %v279
      %v392 = vpop.f32.mrf.mxu0
      %v393 = vadd.f32 0.0, %v392
      %394 = vdwg.mxu0
      %v395 = vadd.f32 %v358, %v393
      %v396 = vtanh.pop %v395
      %v397 = vld [vmem:[#allocation6] sm:$0xff]
      %v398 = vld [vmem:[#allocation6 + $0x8] sm:$0xff]
      %v399 = vld [vmem:[#allocation6 + $0x10] sm:$0xff]
      %v400 = vld [vmem:[#allocation6 + $0x18] sm:$0xff]
      %v401 = vld [vmem:[#allocation6 + $0x20] sm:$0xff]
      %v402 = vld [vmem:[#allocation6 + $0x28] sm:$0xff]
      %v403 = vld [vmem:[#allocation6 + $0x30] sm:$0xff]
      %v404 = vld [vmem:[#allocation6 + $0x38] sm:$0xff]
      %v405 = vld [vmem:[#allocation6 + $0x40] sm:$0xff]
      %v406 = vld [vmem:[#allocation6 + $0x48] sm:$0xff]
      %v407 = vld [vmem:[#allocation6 + $0x50] sm:$0xff]
      %v408 = vld [vmem:[#allocation6 + $0x58] sm:$0xff]
      %v409 = vld [vmem:[#allocation6 + $0x60] sm:$0xff]
      %v410 = vld [vmem:[#allocation6 + $0x68] sm:$0xff]
      %v411 = vld [vmem:[#allocation6 + $0x70] sm:$0xff]
      %v412 = vld [vmem:[#allocation6 + $0x78] sm:$0xff]
      %413 = vmatpush.msra.mxu0 %v412
      %414 = vmatpush.msra.mxu0 %v411
      %415 = vmatpush.msra.mxu0 %v410
      %416 = vmatpush.msra.mxu0 %v409
      %417 = vmatpush.msra.mxu0 %v408
      %418 = vmatpush.msra.mxu0 %v407
      %419 = vmatpush.msra.mxu0 %v406
      %420 = vmatpush.msra.mxu0 %v405
      %421 = vmatpush.msra.mxu0 %v404
      %422 = vmatpush.msra.mxu0 %v403
      %423 = vmatpush.msra.mxu0 %v402
      %424 = vmatpush.msra.mxu0 %v401
      %425 = vmatpush.msra.mxu0 %v400
      %426 = vmatpush.msra.mxu0 %v399
      %427 = vmatpush.msra.mxu0 %v398
      %428 = vmatpush.msra.mxu0 %v397
      %429 = vmatmul.f32.gmra.mxu0 %v396
      %v430 = vpop.f32.mrf.mxu0
      %v431 = vadd.f32 0.0, %v430
      %432 = vdwg.mxu0
      %433 = vmatpush.msra.mxu0 %v356
      %434 = vmatpush.msra.mxu0 %v355
      %435 = vmatpush.msra.mxu0 %v354
      %436 = vmatpush.msra.mxu0 %v353
      %437 = vmatpush.msra.mxu0 %v352
      %438 = vmatpush.msra.mxu0 %v351
      %439 = vmatpush.msra.mxu0 %v350
      %440 = vmatpush.msra.mxu0 %v349
      %441 = vmatpush.msra.mxu0 %v348
      %442 = vmatpush.msra.mxu0 %v347
      %443 = vmatpush.msra.mxu0 %v346
      %444 = vmatpush.msra.mxu0 %v345
      %445 = vmatpush.msra.mxu0 %v344
      %446 = vmatpush.msra.mxu0 %v343
      %447 = vmatpush.msra.mxu0 %v342
      %448 = vmatpush.msra.mxu0 %v341
      %449 = vmatmul.f32.gmra.mxu0 %v337
      %v450 = vpop.f32.mrf.mxu0
      %v451 = vadd.f32 %v431, %v450
      %452 = vdwg.mxu0
      %v453 = vadd.f32 %v451, %v95
      %v454 = vtanh.pop %v453
      %s455 = scalar_lea.vmem [#allocation2], %s340
      %456 = vst [vmem:[%s455] sm:$0x1] %v454
      %s457 = sadd.s32 %s106, 3
      %v458 = vld [vmem:[#allocation8] sm:$0xff]
      %v459 = vld [vmem:[#allocation8 + $0x8] sm:$0xff]
      %v460 = vld [vmem:[#allocation8 + $0x10] sm:$0xff]
      %v461 = vld [vmem:[#allocation8 + $0x18] sm:$0xff]
      %v462 = vld [vmem:[#allocation8 + $0x20] sm:$0xff]
      %v463 = vld [vmem:[#allocation8 + $0x28] sm:$0xff]
      %v464 = vld [vmem:[#allocation8 + $0x30] sm:$0xff]
      %v465 = vld [vmem:[#allocation8 + $0x38] sm:$0xff]
      %v466 = vld [vmem:[#allocation8 + $0x40] sm:$0xff]
      %v467 = vld [vmem:[#allocation8 + $0x48] sm:$0xff]
      %v468 = vld [vmem:[#allocation8 + $0x50] sm:$0xff]
      %v469 = vld [vmem:[#allocation8 + $0x58] sm:$0xff]
      %v470 = vld [vmem:[#allocation8 + $0x60] sm:$0xff]
      %v471 = vld [vmem:[#allocation8 + $0x68] sm:$0xff]
      %v472 = vld [vmem:[#allocation8 + $0x70] sm:$0xff]
      %v473 = vld [vmem:[#allocation8 + $0x78] sm:$0xff]
      %s474 = scalar_lea.vmem %s0, %s457
      %v475 = vld [vmem:[%s474] sm:$0x1]
      %v476 = vld [vmem:[#allocation3] sm:$0xff]
      %v477 = vld [vmem:[#allocation3 + $0x8] sm:$0xff]
      %v478 = vld [vmem:[#allocation3 + $0x10] sm:$0xff]
      %v479 = vld [vmem:[#allocation3 + $0x18] sm:$0xff]
      %v480 = vld [vmem:[#allocation3 + $0x20] sm:$0xff]
      %v481 = vld [vmem:[#allocation3 + $0x28] sm:$0xff]
      %v482 = vld [vmem:[#allocation3 + $0x30] sm:$0xff]
      %v483 = vld [vmem:[#allocation3 + $0x38] sm:$0xff]
      %v484 = vld [vmem:[#allocation3 + $0x40] sm:$0xff]
      %v485 = vld [vmem:[#allocation3 + $0x48] sm:$0xff]
      %v486 = vld [vmem:[#allocation3 + $0x50] sm:$0xff]
      %v487 = vld [vmem:[#allocation3 + $0x58] sm:$0xff]
      %v488 = vld [vmem:[#allocation3 + $0x60] sm:$0xff]
      %v489 = vld [vmem:[#allocation3 + $0x68] sm:$0xff]
      %v490 = vld [vmem:[#allocation3 + $0x70] sm:$0xff]
      %v491 = vld [vmem:[#allocation3 + $0x78] sm:$0xff]
      %492 = vmatpush.msra.mxu0 %v491
      %493 = vmatpush.msra.mxu0 %v490
      %494 = vmatpush.msra.mxu0 %v489
      %495 = vmatpush.msra.mxu0 %v488
      %496 = vmatpush.msra.mxu0 %v487
      %497 = vmatpush.msra.mxu0 %v486
      %498 = vmatpush.msra.mxu0 %v485
      %499 = vmatpush.msra.mxu0 %v484
      %500 = vmatpush.msra.mxu0 %v483
      %501 = vmatpush.msra.mxu0 %v482
      %502 = vmatpush.msra.mxu0 %v481
      %503 = vmatpush.msra.mxu0 %v480
      %504 = vmatpush.msra.mxu0 %v479
      %505 = vmatpush.msra.mxu0 %v478
      %506 = vmatpush.msra.mxu0 %v477
      %507 = vmatpush.msra.mxu0 %v476
      %508 = vmatmul.f32.gmra.mxu0 %v396
      %v509 = vpop.f32.mrf.mxu0
      %v510 = vadd.f32 0.0, %v509
      %511 = vdwg.mxu0
      %v512 = vadd.f32 %v475, %v510
      %v513 = vtanh.pop %v512
      %v514 = vld [vmem:[#allocation6] sm:$0xff]
      %v515 = vld [vmem:[#allocation6 + $0x8] sm:$0xff]
      %v516 = vld [vmem:[#allocation6 + $0x10] sm:$0xff]
      %v517 = vld [vmem:[#allocation6 + $0x18] sm:$0xff]
      %v518 = vld [vmem:[#allocation6 + $0x20] sm:$0xff]
      %v519 = vld [vmem:[#allocation6 + $0x28] sm:$0xff]
      %v520 = vld [vmem:[#allocation6 + $0x30] sm:$0xff]
      %v521 = vld [vmem:[#allocation6 + $0x38] sm:$0xff]
      %v522 = vld [vmem:[#allocation6 + $0x40] sm:$0xff]
      %v523 = vld [vmem:[#allocation6 + $0x48] sm:$0xff]
      %v524 = vld [vmem:[#allocation6 + $0x50] sm:$0xff]
      %v525 = vld [vmem:[#allocation6 + $0x58] sm:$0xff]
      %v526 = vld [vmem:[#allocation6 + $0x60] sm:$0xff]
      %v527 = vld [vmem:[#allocation6 + $0x68] sm:$0xff]
      %v528 = vld [vmem:[#allocation6 + $0x70] sm:$0xff]
      %v529 = vld [vmem:[#allocation6 + $0x78] sm:$0xff]
      %530 = vmatpush.msra.mxu0 %v529
      %531 = vmatpush.msra.mxu0 %v528
      %532 = vmatpush.msra.mxu0 %v527
      %533 = vmatpush.msra.mxu0 %v526
      %534 = vmatpush.msra.mxu0 %v525
      %535 = vmatpush.msra.mxu0 %v524
      %536 = vmatpush.msra.mxu0 %v523
      %537 = vmatpush.msra.mxu0 %v522
      %538 = vmatpush.msra.mxu0 %v521
      %539 = vmatpush.msra.mxu0 %v520
      %540 = vmatpush.msra.mxu0 %v519
      %541 = vmatpush.msra.mxu0 %v518
      %542 = vmatpush.msra.mxu0 %v517
      %543 = vmatpush.msra.mxu0 %v516
      %544 = vmatpush.msra.mxu0 %v515
      %545 = vmatpush.msra.mxu0 %v514
      %546 = vmatmul.f32.gmra.mxu0 %v513
      %v547 = vpop.f32.mrf.mxu0
      %v548 = vadd.f32 0.0, %v547
      %549 = vdwg.mxu0
      %550 = vmatpush.msra.mxu0 %v473
      %551 = vmatpush.msra.mxu0 %v472
      %552 = vmatpush.msra.mxu0 %v471
      %553 = vmatpush.msra.mxu0 %v470
      %554 = vmatpush.msra.mxu0 %v469
      %555 = vmatpush.msra.mxu0 %v468
      %556 = vmatpush.msra.mxu0 %v467
      %557 = vmatpush.msra.mxu0 %v466
      %558 = vmatpush.msra.mxu0 %v465
      %559 = vmatpush.msra.mxu0 %v464
      %560 = vmatpush.msra.mxu0 %v463
      %561 = vmatpush.msra.mxu0 %v462
      %562 = vmatpush.msra.mxu0 %v461
      %563 = vmatpush.msra.mxu0 %v460
      %564 = vmatpush.msra.mxu0 %v459
      %565 = vmatpush.msra.mxu0 %v458
      %566 = vmatmul.f32.gmra.mxu0 %v454
      %v567 = vpop.f32.mrf.mxu0
      %v568 = vadd.f32 %v548, %v567
      %569 = vdwg.mxu0
      %v570 = vadd.f32 %v568, %v95
      %v571 = vtanh.pop %v570
      %s572 = scalar_lea.vmem [#allocation2], %s457
      %573 = vst [vmem:[%s572] sm:$0x1] %v571
    $region54: #{shakespeare_rnn_forward.1} parent=1 // loop_footer
      %s103 = sadd.s32 1, %s99
    $region55: #{shakespeare_rnn_forward.1} parent=1 // loop_footer_branch
      %98 = sbr.rel target = $region51
    $region56: #{shakespeare_rnn_forward.1} parent=1 // loop_exit
      _
    %574 = vst [vmem:[%s9] sm:$0x1] %v104
    %575 = vst [vmem:[%s9 + $0x1] sm:$0x1] %v105
    %v576 = vld [vmem:[#allocation2] sm:$0xff]
    %v577 = vld [vmem:[#allocation9] sm:$0xff]
    %v578 = vld [vmem:[#allocation9 + $0x8] sm:$0xff]
    %v579 = vld [vmem:[#allocation9 + $0x10] sm:$0xff]
    %v580 = vld [vmem:[#allocation9 + $0x18] sm:$0xff]
    %v581 = vld [vmem:[#allocation9 + $0x20] sm:$0xff]
    %v582 = vld [vmem:[#allocation9 + $0x28] sm:$0xff]
    %v583 = vld [vmem:[#allocation9 + $0x30] sm:$0xff]
    %v584 = vld [vmem:[#allocation9 + $0x38] sm:$0xff]
    %v585 = vld [vmem:[#allocation9 + $0x40] sm:$0xff]
    %v586 = vld [vmem:[#allocation9 + $0x48] sm:$0xff]
    %v587 = vld [vmem:[#allocation9 + $0x50] sm:$0xff]
    %v588 = vld [vmem:[#allocation9 + $0x58] sm:$0xff]
    %v589 = vld [vmem:[#allocation9 + $0x60] sm:$0xff]
    %v590 = vld [vmem:[#allocation9 + $0x68] sm:$0xff]
    %v591 = vld [vmem:[#allocation9 + $0x70] sm:$0xff]
    %v592 = vld [vmem:[#allocation9 + $0x78] sm:$0xff]
    %v593 = vld [vmem:[%s6] sm:$0x1]
    %v595 = vperm.slane %v593, 0
    %597 = vmatpush.msra.mxu0 %v592
    %598 = vmatpush.msra.mxu0 %v591
    %599 = vmatpush.msra.mxu0 %v590
    %600 = vmatpush.msra.mxu0 %v589
    %601 = vmatpush.msra.mxu0 %v588
    %602 = vmatpush.msra.mxu0 %v587
    %603 = vmatpush.msra.mxu0 %v586
    %604 = vmatpush.msra.mxu0 %v585
    %605 = vmatpush.msra.mxu0 %v584
    %606 = vmatpush.msra.mxu0 %v583
    %607 = vmatpush.msra.mxu0 %v582
    %608 = vmatpush.msra.mxu0 %v581
    %609 = vmatpush.msra.mxu0 %v580
    %610 = vmatpush.msra.mxu0 %v579
    %611 = vmatpush.msra.mxu0 %v578
    %612 = vmatpush.msra.mxu0 %v577
    %613 = vmatmul.f32.gmra.mxu0 %v576
    %v614 = vpop.f32.mrf.mxu0
    %v615 = vadd.f32 %v595, %v614
    %616 = vdwg.mxu0
    %617 = vst [vmem:[#allocation11] sm:$0xff] %v615
    // Predicated region
    $region57: #{shakespeare_rnn_forward.1} parent=1 // pred_check
      _
    $region58: #{shakespeare_rnn_forward.1} parent=1 // pred_check_branch
      %619 = sbr.rel (0) target = $region60
    $region59: #{shakespeare_rnn_forward.1} parent=1 // pred_region
      %621 = vsyncadd [#allocation5], 0
      %s623 = sshll.u32 [#allocation11], 4
      %s624 = int_to_ptr.vmem [resolvable:$true] %s623
      %s625 = sshll.u32 %s8, 4
      %s626 = int_to_ptr.hbm [resolvable:$true] %s625
      %628 = dma.vmem_to_hbm [thread:$0]  %s624, 128, %s626, [#allocation5]
    $region60: #{shakespeare_rnn_forward.1} parent=1 // pred_fallthru
      _
    // Predicated region
    $region61: #{shakespeare_rnn_forward.1} parent=1 // pred_check
      _
    $region62: #{shakespeare_rnn_forward.1} parent=1 // pred_check_branch
      %630 = sbr.rel (0) target = $region64
    $region63: #{shakespeare_rnn_forward.1} parent=1 // pred_region
      _
    $region64: #{shakespeare_rnn_forward.1} parent=1 // pred_fallthru
      _
    // Predicated region
    $region65: #{shakespeare_rnn_forward.1} parent=1 // pred_check
      _
    $region66: #{shakespeare_rnn_forward.1} parent=1 // pred_check_branch
      %632 = sbr.rel (0) target = $region68
    $region67: #{shakespeare_rnn_forward.1} parent=1 // pred_region
      %634 = dma.done [#allocation5], 128
    $region68: #{shakespeare_rnn_forward.1} parent=1 // pred_fallthru
      _
    // Predicated region
    $region69: #{shakespeare_rnn_forward.1} parent=1 // pred_check
      _
    $region70: #{shakespeare_rnn_forward.1} parent=1 // pred_check_branch
      %636 = sbr.rel (0) target = $region72
    $region71: #{shakespeare_rnn_forward.1} parent=1 // pred_region
      _
    $region72: #{shakespeare_rnn_forward.1} parent=1 // pred_fallthru
      _
    %637 = vsyncpa [#allocation4], 1
    %638 = vsyncpa [#allocation7], 1
    %639 = vsyncpa [#allocation10], 1
    %640 = vsyncpa [#allocation5], 1

</llo_original>
